<compile_context>
chip_gen: v5e
topology: v5e:2x2
jax: 0.10.0
libtpu: 0.0.40
codegen_flags: <defaults>
</compile_context>

<pallas_src>
import math

import jax
import jax.numpy as jnp
from jax import lax
from jax.experimental import pallas as pl
from jax.experimental.pallas import tpu as pltpu

_INV_SQRT2 = 1.0 / math.sqrt(2.0)


def _ffn_body(x_ref, w1_ref, b1_ref, w2_ref, b2_ref, o_ref, acc_ref):
    # x_ref:  (TM, D)   input row tile, matmul dtype (bf16) — cast hoisted out of the kernel
    # w1_ref: (D, TH)   first-layer weight slice (bf16)
    # b1_ref: (1, TH)   first-layer bias slice (f32)
    # w2_ref: (TH, D)   second-layer weight slice (bf16)
    # b2_ref: (1, D)    second-layer bias (f32, VMEM-resident)
    # o_ref:  (TM, D)   output row tile (resident across the H reduction axis)
    # acc_ref: (TM, D) f32 accumulator, or None when o_ref is already f32
    j = pl.program_id(1)
    acc = o_ref if acc_ref is None else acc_ref

    @pl.when(j == 0)
    def _():
        acc[...] = jnp.zeros_like(acc)

    # First linear on the MXU (bf16 inputs, f32 accumulation) + bias in f32.
    h = jnp.dot(x_ref[...], w1_ref[...], preferred_element_type=jnp.float32) + b1_ref[...]

    # Dropout(p=0.0) is the identity. Exact (erf) GELU, matching torch.nn.GELU default.
    g = 0.5 * h * (1.0 + lax.erf(h * _INV_SQRT2))

    # Second linear: accumulate this H-slice's partial product.
    acc[...] += jnp.dot(
        g.astype(w2_ref.dtype), w2_ref[...], preferred_element_type=jnp.float32
    )

    @pl.when(j == pl.num_programs(1) - 1)
    def _():
        if acc_ref is None:
            o_ref[...] += b2_ref[...]
        else:
            o_ref[...] = (acc_ref[...] + b2_ref[...]).astype(o_ref.dtype)


def _ffn_kernel_acc(x_ref, w1_ref, b1_ref, w2_ref, b2_ref, o_ref, acc_ref):
    _ffn_body(x_ref, w1_ref, b1_ref, w2_ref, b2_ref, o_ref, acc_ref)


def _ffn_kernel_noacc(x_ref, w1_ref, b1_ref, w2_ref, b2_ref, o_ref):
    _ffn_body(x_ref, w1_ref, b1_ref, w2_ref, b2_ref, o_ref, None)


def _round_up(a, b):
    return ((a + b - 1) // b) * b


def _physical_vmem_bytes():
    """Per-TensorCore VMEM capacity; conservative v7x-sized fallback if the query fails."""
    try:
        info = pltpu.get_tpu_info()
        v = getattr(info, "vmem_capacity_bytes", None)
        if v:
            return int(v)
    except Exception:
        pass
    return 64 * 1024 * 1024


def _choose_tiles(M, D, H_pad, out_itemsize, use_acc, tm_target):
    """VMEM-budget-aware (TM, TH, vmem_limit_bytes) selection."""
    phys = _physical_vmem_bytes()
    budget = phys - max(phys // 6, 8 << 20)  # headroom for compiler-internal scratch

    # w1 + w2 slices, bf16, double-buffered: 2 buffers * 2 tensors * (D*TH*2 B) = 8*D*TH.
    def w_bytes(th):
        return 8 * D * th

    weight_budget = budget // 2
    if w_bytes(H_pad) <= weight_budget:
        TH = H_pad  # grid_h == 1 -> weight block index never changes -> DMA'd exactly once
    else:
        TH = max((weight_budget // (8 * D)) // 128 * 128, 128)
        TH = min(TH, H_pad)
        while TH > 128 and H_pad % TH != 0:  # must divide H_pad (a multiple of 128)
            TH -= 128

    bias_bytes = 2 * TH * 4 + 2 * D * 4

    def row_bytes(t):
        b = 2 * t * D * 2 + 2 * t * D * out_itemsize  # x (bf16) + out tiles, double-buffered
        if use_acc:
            b += t * D * 4  # persistent f32 accumulator scratch
        return b

    remaining = max(budget - w_bytes(TH) - bias_bytes, 0)
    TM = min(_round_up(tm_target, 8), _round_up(M, 8))
    while TM > 8 and row_bytes(TM) > remaining:
        TM = max(8, _round_up(TM // 2, 8))

    needed = w_bytes(TH) + bias_bytes + row_bytes(TM)
    vmem_limit = int(min(budget, max(needed + needed // 2 + (4 << 20), 32 << 20)))
    return TM, TH, vmem_limit


def feed_forward(x, w1, b1, w2, b2, *, tm=512, matmul_dtype=jnp.bfloat16, out_dtype=None):
    """x: (B, S, D); w1: (D, 4D); b1: (4D,); w2: (4D, D); b2: (D,). y = GELU(x@w1+b1)@w2+b2.

    For best performance pre-cast w1/w2 to `matmul_dtype` outside this function (the casts
    below are then no-ops and weights are never re-read in f32).
    """
    B, S, D = x.shape
    H = w1.shape[1]
    M = B * S
    out_dtype = x.dtype if out_dtype is None else out_dtype

    x2d = x.reshape(M, D)
    if x2d.dtype != matmul_dtype:
        x2d = x2d.astype(matmul_dtype)  # cast once here, not per H-slice inside the kernel
    if w1.dtype != matmul_dtype:
        w1 = w1.astype(matmul_dtype)
    if w2.dtype != matmul_dtype:
        w2 = w2.astype(matmul_dtype)
    b1 = jnp.asarray(b1, jnp.float32).reshape(1, H)
    b2 = jnp.asarray(b2, jnp.float32).reshape(1, D)

    # Pad H to a lane-dense multiple of 128. Exact: zero w1 cols / b1 entries / w2 rows
    # contribute nothing to the output.
    H_pad = _round_up(H, 128)
    if H_pad != H:
        w1 = jnp.pad(w1, ((0, 0), (0, H_pad - H)))
        b1 = jnp.pad(b1, ((0, 0), (0, H_pad - H)))
        w2 = jnp.pad(w2, ((0, H_pad - H), (0, 0)))

    # TODO(synk): for fully lane-dense stores D itself should be a multiple of 128; typical
    # transformer dims are, the demo's D=32 is not but full-dim blocks remain correct.

    out_itemsize = jnp.dtype(out_dtype).itemsize
    use_acc = jnp.dtype(out_dtype) != jnp.dtype(jnp.float32)
    TM, TH, vmem_limit = _choose_tiles(M, D, H_pad, out_itemsize, use_acc, tm)

    grid_m = pl.cdiv(M, TM)   # no jnp.pad of the activations; Pallas masks boundary stores
    grid_h = H_pad // TH
    grid = (grid_m, grid_h)

    # Weights are re-fetched per row tile only when the H axis is actually tiled.
    weight_reads = grid_m if grid_h > 1 else 1
    cost = pl.CostEstimate(
        flops=4 * M * D * H_pad,       # two (M, D, H) matmuls
        transcendentals=M * H_pad,     # erf in GELU
        bytes_accessed=(
            grid_m * TM * D * x2d.dtype.itemsize
            + weight_reads
            * (w1.size * w1.dtype.itemsize + w2.size * w2.dtype.itemsize + b1.size * 4)
            + b2.size * 4
            + M * D * out_itemsize
        ),
    )

    kernel = _ffn_kernel_acc if use_acc else _ffn_kernel_noacc
    scratch = [pltpu.VMEM((TM, D), jnp.float32)] if use_acc else []

    out = pl.pallas_call(
        kernel,
        out_shape=jax.ShapeDtypeStruct((M, D), out_dtype),
        grid_spec=pltpu.PrefetchScalarGridSpec(
            num_scalar_prefetch=0,
            grid=grid,
            in_specs=[
                pl.BlockSpec((TM, D), lambda i, j: (i, 0)),   # x row tile (bf16)
                pl.BlockSpec((D, TH), lambda i, j: (0, j)),   # w1 H-slice
                pl.BlockSpec((1, TH), lambda i, j: (0, j)),   # b1 H-slice
                pl.BlockSpec((TH, D), lambda i, j: (j, 0)),   # w2 H-slice
                pl.BlockSpec((1, D), lambda i, j: (0, 0)),    # b2 (resident)
            ],
            out_specs=pl.BlockSpec((TM, D), lambda i, j: (i, 0)),
            scratch_shapes=scratch,
        ),
        compiler_params=pltpu.CompilerParams(
            dimension_semantics=("parallel", "arbitrary"),
            vmem_limit_bytes=vmem_limit,
        ),
        cost_estimate=cost,
    )(x2d, w1, b1, w2, b2)

    return out.reshape(B, S, D)


def reference_ffn(x2d, w1, b1, w2, b2, matmul_dtype=None):
    """Plain-JAX reference; optionally mimics the kernel's bf16 matmul inputs."""
    if matmul_dtype is not None:
        xm = x2d.astype(matmul_dtype)
        w1m = w1.astype(matmul_dtype)
        w2m = w2.astype(matmul_dtype)
    else:
        xm, w1m, w2m = x2d, w1, w2
    h = jnp.dot(xm, w1m, preferred_element_type=jnp.float32) + b1.reshape(1, -1)
    g = 0.5 * h * (1.0 + lax.erf(h * _INV_SQRT2))
    gm = g.astype(matmul_dtype) if matmul_dtype is not None else g
    return jnp.dot(gm, w2m, preferred_element_type=jnp.float32) + b2.reshape(1, -1)


if __name__ == "__main__":
    # Small shapes consistent with the module: batch=2, seq=8, dim=32 (hidden=128).
    B, S, D = 2, 8, 32
    H = 4 * D

    key = jax.random.PRNGKey(0)
    kx, kw1, kb1, kw2, kb2 = jax.random.split(key, 5)

    x = jax.random.normal(kx, (B, S, D), dtype=jnp.float32)

    # Deterministic parameter init mimicking torch.nn.Linear defaults
    # (uniform(-1/sqrt(fan_in), 1/sqrt(fan_in))). Stored as (in, out) so y = x @ W + b.
    bound1 = 1.0 / math.sqrt(D)
    w1 = jax.random.uniform(kw1, (D, H), jnp.float32, -bound1, bound1)
    b1 = jax.random.uniform(kb1, (H,), jnp.float32, -bound1, bound1)
    bound2 = 1.0 / math.sqrt(H)
    w2 = jax.random.uniform(kw2, (H, D), jnp.float32, -bound2, bound2)
    b2 = jax.random.uniform(kb2, (D,), jnp.float32, -bound2, bound2)

    # Pre-cast weights to the MXU dtype once, outside the kernel call (perf review).
    w1_bf16 = w1.astype(jnp.bfloat16)
    w2_bf16 = w2.astype(jnp.bfloat16)

    out = feed_forward(x, w1_bf16, b1, w2_bf16, b2)
    out = jax.block_until_ready(out)
    assert out.shape == (B, S, D)
    assert out.dtype == x.dtype

    x2d = x.reshape(B * S, D)
    # Check against a reference that uses the same bf16 matmul inputs (tight tolerance).
    ref_bf16 = reference_ffn(x2d, w1, b1, w2, b2, matmul_dtype=jnp.bfloat16).reshape(B, S, D)
    assert jnp.allclose(out, ref_bf16, atol=2e-3, rtol=2e-3), "mismatch vs bf16-matmul reference"
    # Sanity check against the full-f32 reference (loose tolerance due to bf16 matmul inputs).
    ref_f32 = reference_ffn(x2d, w1, b1, w2, b2, matmul_dtype=None).reshape(B, S, D)
    assert jnp.allclose(out, ref_f32, atol=5e-2, rtol=5e-2), "mismatch vs f32 reference"

    print("KERNEL_OK")
</pallas_src>

<mosaic_0001>
module attributes {stable_mosaic.version = 11 : i64} {
  func.func @_ffn_kernel_noacc(%arg0: i32, %arg1: i32, %arg2: memref<16x32xbf16, #tpu.memory_space<vmem>>, %arg3: memref<32x128xbf16, #tpu.memory_space<vmem>>, %arg4: memref<1x128xf32, #tpu.memory_space<vmem>>, %arg5: memref<128x32xbf16, #tpu.memory_space<vmem>>, %arg6: memref<1x32xf32, #tpu.memory_space<vmem>>, %arg7: memref<16x32xf32, #tpu.memory_space<vmem>>) attributes {dimension_semantics = [#tpu.dimension_semantics<parallel>, #tpu.dimension_semantics<arbitrary>], iteration_bounds = array<i64: 1, 1>, scalar_prefetch = 0 : i64, scratch_operands = 0 : i64, tpu.core_type = #tpu.core_type<tc>, window_params = [{transform_indices = @transform_0, window_bounds = array<i64: 16, 32>}, {transform_indices = @transform_1, window_bounds = array<i64: 32, 128>}, {transform_indices = @transform_2, window_bounds = array<i64: 1, 128>}, {transform_indices = @transform_3, window_bounds = array<i64: 128, 32>}, {pipeline_mode = #tpu.pipeline_mode<synchronous>, transform_indices = @transform_4, window_bounds = array<i64: 1, 32>}, {transform_indices = @transform_5, window_bounds = array<i64: 16, 32>}]} {
    %c0_i32 = arith.constant 0 : i32
    %0 = arith.cmpi eq, %arg1, %c0_i32 : i32
    %1 = arith.extui %0 : i1 to i32
    %c0_i32_0 = arith.constant 0 : i32
    %2 = arith.cmpi ne, %1, %c0_i32_0 : i32
    scf.if %2 {
      %cst_18 = arith.constant 0.000000e+00 : f32
      %26 = vector.broadcast %cst_18 : f32 to vector<16x32xf32>
      %c0_19 = arith.constant 0 : index
      %c0_20 = arith.constant 0 : index
      %27 = vector.load %arg7[%c0_19, %c0_20] : memref<16x32xf32, #tpu.memory_space<vmem>>, vector<16x32xf32>
      tpu.vector_store %arg7[%c0_19, %c0_20], %26 {strides = array<i32>} : memref<16x32xf32, #tpu.memory_space<vmem>>, vector<16x32xf32>,
    } else {
    }
    %c0 = arith.constant 0 : index
    %c0_1 = arith.constant 0 : index
    %3 = vector.load %arg2[%c0, %c0_1] : memref<16x32xbf16, #tpu.memory_space<vmem>>, vector<16x32xbf16>
    %c0_2 = arith.constant 0 : index
    %c0_3 = arith.constant 0 : index
    %4 = vector.load %arg3[%c0_2, %c0_3] : memref<32x128xbf16, #tpu.memory_space<vmem>>, vector<32x128xbf16>
    %cst = arith.constant dense<0.000000e+00> : vector<16x128xf32>
    %5 = tpu.matmul %3, %4, %cst {dimension_numbers = #tpu.dot_dimension_numbers<[1], [0], [0], [1], [0, 0, 1, 1], [], []>} : vector<16x32xbf16>, vector<32x128xbf16>, vector<16x128xf32> -> vector<16x128xf32>
    %c0_4 = arith.constant 0 : index
    %c0_5 = arith.constant 0 : index
    %6 = vector.load %arg4[%c0_4, %c0_5] : memref<1x128xf32, #tpu.memory_space<vmem>>, vector<1x128xf32>
    %7 = vector.broadcast %6 : vector<1x128xf32> to vector<16x128xf32>
    %8 = arith.addf %5, %7 : vector<16x128xf32>
    %cst_6 = arith.constant 5.000000e-01 : f32
    %9 = vector.broadcast %cst_6 : f32 to vector<16x128xf32>
    %10 = arith.mulf %9, %8 : vector<16x128xf32>
    %cst_7 = arith.constant 0.707106769 : f32
    %11 = vector.broadcast %cst_7 : f32 to vector<16x128xf32>
    %12 = arith.mulf %8, %11 : vector<16x128xf32>
    %13 = math.erf %12 : vector<16x128xf32>
    %cst_8 = arith.constant 1.000000e+00 : f32
    %14 = vector.broadcast %cst_8 : f32 to vector<16x128xf32>
    %15 = arith.addf %14, %13 : vector<16x128xf32>
    %16 = arith.mulf %10, %15 : vector<16x128xf32>
    %c0_9 = arith.constant 0 : index
    %c0_10 = arith.constant 0 : index
    %17 = vector.load %arg7[%c0_9, %c0_10] : memref<16x32xf32, #tpu.memory_space<vmem>>, vector<16x32xf32>
    %18 = arith.truncf %16 : vector<16x128xf32> to vector<16x128xbf16>
    %c0_11 = arith.constant 0 : index
    %c0_12 = arith.constant 0 : index
    %19 = vector.load %arg5[%c0_11, %c0_12] : memref<128x32xbf16, #tpu.memory_space<vmem>>, vector<128x32xbf16>
    %cst_13 = arith.constant dense<0.000000e+00> : vector<16x32xf32>
    %20 = tpu.matmul %18, %19, %cst_13 {dimension_numbers = #tpu.dot_dimension_numbers<[1], [0], [0], [1], [0, 0, 1, 1], [], []>} : vector<16x128xbf16>, vector<128x32xbf16>, vector<16x32xf32> -> vector<16x32xf32>
    %21 = arith.addf %17, %20 : vector<16x32xf32>
    %c0_14 = arith.constant 0 : index
    %c0_15 = arith.constant 0 : index
    %22 = vector.load %arg7[%c0_14, %c0_15] : memref<16x32xf32, #tpu.memory_space<vmem>>, vector<16x32xf32>
    tpu.vector_store %arg7[%c0_14, %c0_15], %21 {strides = array<i32>} : memref<16x32xf32, #tpu.memory_space<vmem>>, vector<16x32xf32>,
    %c0_i32_16 = arith.constant 0 : i32
    %23 = arith.cmpi eq, %arg1, %c0_i32_16 : i32
    %24 = arith.extui %23 : i1 to i32
    %c0_i32_17 = arith.constant 0 : i32
    %25 = arith.cmpi ne, %24, %c0_i32_17 : i32
    scf.if %25 {
      %c0_18 = arith.constant 0 : index
      %c0_19 = arith.constant 0 : index
      %26 = vector.load %arg7[%c0_18, %c0_19] : memref<16x32xf32, #tpu.memory_space<vmem>>, vector<16x32xf32>
      %c0_20 = arith.constant 0 : index
      %c0_21 = arith.constant 0 : index
      %27 = vector.load %arg6[%c0_20, %c0_21] : memref<1x32xf32, #tpu.memory_space<vmem>>, vector<1x32xf32>
      %28 = vector.broadcast %27 : vector<1x32xf32> to vector<16x32xf32>
      %29 = arith.addf %26, %28 : vector<16x32xf32>
      %c0_22 = arith.constant 0 : index
      %c0_23 = arith.constant 0 : index
      %30 = vector.load %arg7[%c0_22, %c0_23] : memref<16x32xf32, #tpu.memory_space<vmem>>, vector<16x32xf32>
      tpu.vector_store %arg7[%c0_22, %c0_23], %29 {strides = array<i32>} : memref<16x32xf32, #tpu.memory_space<vmem>>, vector<16x32xf32>,
    } else {
    }
    return
  }
  func.func @transform_0(%arg0: i32, %arg1: i32) -> (i32, i32) {
    %c0_i32 = arith.constant 0 : i32
    %c0_i32_0 = arith.constant 0 : i32
    return %arg0, %c0_i32 : i32, i32
  }
  func.func @transform_1(%arg0: i32, %arg1: i32) -> (i32, i32) {
    %c0_i32 = arith.constant 0 : i32
    %c0_i32_0 = arith.constant 0 : i32
    return %c0_i32, %arg1 : i32, i32
  }
  func.func @transform_2(%arg0: i32, %arg1: i32) -> (i32, i32) {
    %c0_i32 = arith.constant 0 : i32
    %c0_i32_0 = arith.constant 0 : i32
    return %c0_i32, %arg1 : i32, i32
  }
  func.func @transform_3(%arg0: i32, %arg1: i32) -> (i32, i32) {
    %c0_i32 = arith.constant 0 : i32
    %c0_i32_0 = arith.constant 0 : i32
    return %arg1, %c0_i32 : i32, i32
  }
  func.func @transform_4(%arg0: i32, %arg1: i32) -> (i32, i32) {
    %c0_i32 = arith.constant 0 : i32
    %c0_i32_0 = arith.constant 0 : i32
    %c0_i32_1 = arith.constant 0 : i32
    return %c0_i32, %c0_i32_0 : i32, i32
  }
  func.func @transform_5(%arg0: i32, %arg1: i32) -> (i32, i32) {
    %c0_i32 = arith.constant 0 : i32
    %c0_i32_0 = arith.constant 0 : i32
    return %arg0, %c0_i32 : i32, i32
  }
}

</mosaic_0001>

<llo_original>
// kernel: tpu_custom_call.1
$region0: #{tpu_custom_call.1}
  #allocation0 [shape = 'u32[]', space=smem, size = 0x4, offset = 0x4, fixed_abs, tag = 'smem constant byte address 0x4 - core index']
  #allocation1 [shape = 'u32[72,128]{1,0:T(1,128)}', space=vmem, size = 0x9000, scoped, tag = 'internal scratch']
  %s0 = inlined_call_operand.vmem [shape: bf16[16,32], index: 0, kind: input, shape index: {}]
  %s1 = inlined_call_operand.vmem [shape: bf16[32,128], index: 1, kind: input, shape index: {}]
  %s2 = inlined_call_operand.vmem [shape: f32[1,128], index: 2, kind: input, shape index: {}]
  %s3 = inlined_call_operand.vmem [shape: bf16[128,32], index: 3, kind: input, shape index: {}]
  %s4 = inlined_call_operand.vmem [shape: f32[1,32], index: 4, kind: input, shape index: {}]
  %s5 = inlined_call_operand.hbm [shape: f32[16,32], index: 5, kind: output, shape index: {}]
  %s6 = sld [smem:[#allocation0]]
  $region38: #{tpu_custom_call.1} parent=0
    _
  %s8 = ssub.s32 1, %s6
  %s9 = scalar_select 0, %s8, %s6
  $region1: #{tpu_custom_call.1} parent=0
    #allocation2 [shape = 'u8[8192]{0}', space=vmem, size = 0x2000, scoped, tag = 'output window, operand 0, single buffered']
    #allocation3 [shape = 's32[1]{0}', space=sflag, size = 0x4, scoped, tag = 'scoped memory for tpu_custom_call.1']
    %10 = vsyncpa [#allocation3], 0
    // Predicated region
    $region2: #{tpu_custom_call.1} parent=1 // pred_check
      _
    $region3: #{tpu_custom_call.1} parent=1 // pred_check_branch
      %12 = sbr.rel (0) target = $region5
    $region4: #{tpu_custom_call.1} parent=1 // pred_region
      _
    $region5: #{tpu_custom_call.1} parent=1 // pred_fallthru
      _
    // Predicated region
    $region6: #{tpu_custom_call.1} parent=1 // pred_check
      _
    $region7: #{tpu_custom_call.1} parent=1 // pred_check_branch
      %14 = sbr.rel (0) target = $region9
    $region8: #{tpu_custom_call.1} parent=1 // pred_region
      _
    $region9: #{tpu_custom_call.1} parent=1 // pred_fallthru
      _
    // Predicated region
    $region10: #{tpu_custom_call.1} parent=1 // pred_check
      _
    $region11: #{tpu_custom_call.1} parent=1 // pred_check_branch
      %16 = sbr.rel (0) target = $region13
    $region12: #{tpu_custom_call.1} parent=1 // pred_region
      _
    $region13: #{tpu_custom_call.1} parent=1 // pred_fallthru
      _
    // Predicated region
    $region14: #{tpu_custom_call.1} parent=1 // pred_check
      _
    $region15: #{tpu_custom_call.1} parent=1 // pred_check_branch
      %18 = sbr.rel (0) target = $region17
    $region16: #{tpu_custom_call.1} parent=1 // pred_region
      _
    $region17: #{tpu_custom_call.1} parent=1 // pred_fallthru
      _
    // Predicated region
    $region18: #{tpu_custom_call.1} parent=1 // pred_check
      _
    $region19: #{tpu_custom_call.1} parent=1 // pred_check_branch
      %20 = sbr.rel (0) target = $region21
    $region20: #{tpu_custom_call.1} parent=1 // pred_region
      _
    $region21: #{tpu_custom_call.1} parent=1 // pred_fallthru
      _
    %p22 = scmp.eq.s32.totalorder 0, 0
    // Predicated region
    $region22: #{tpu_custom_call.1} parent=1 // pred_check
      %p23 = pneg %p22
    $region23: #{tpu_custom_call.1} parent=1 // pred_check_branch
      %25 = sbr.rel (%p23) target = $region25
    $region24: #{tpu_custom_call.1} parent=1 // pred_region
      %vm26 = vcmask 261120
      %27 = vst.msk [vmem:[#allocation2] sm:$0xff] %vm26, 0.0
      %28 = vst.msk [vmem:[#allocation2 + $0x8] sm:$0xff] %vm26, 0.0
    $region25: #{tpu_custom_call.1} parent=1 // pred_fallthru
      _
    %v29 = vld [vmem:[%s0] sm:$0xf]
    %v30 = vld [vmem:[%s0 + $0x4] sm:$0xf]
    %v31 = vld [vmem:[%s1] sm:$0xf]
    %v32 = vld [vmem:[%s1 + $0x4] sm:$0xf]
    %v33 = vld [vmem:[%s1 + $0x8] sm:$0xf]
    %v34 = vld [vmem:[%s1 + $0xc] sm:$0xf]
    %v35 = vld [vmem:[%s2] sm:$0x1]
    %v37 = vperm.slane %v35, 0
    %v41 = vunpack.c.l.b16 %v29
    %v42 = vunpack.c.l.b16 %v30
    %v43 = vpack.c.b16 %v42, %v41
    %v48 = vunpack.c.l.b16 %v31
    %v49 = vunpack.c.l.b16 %v32
    %v50 = vunpack.c.l.b16 %v33
    %v51 = vunpack.c.l.b16 %v34
    %v52 = vpack.c.b16 %v49, %v48
    %v53 = vpack.c.b16 %v51, %v50
    %vm56 = vcmask 261120
    %v58 = vsel %vm56, %v43, 0
    %60 = vmatpush.bf16.msra.mxu0 0
    %61 = vmatpush.bf16.msra.mxu0 0
    %62 = vmatpush.bf16.msra.mxu0 0
    %63 = vmatpush.bf16.msra.mxu0 0
    %64 = vmatpush.bf16.msra.mxu0 0
    %65 = vmatpush.bf16.msra.mxu0 0
    %66 = vmatpush.bf16.msra.mxu0 %v53
    %67 = vmatpush.bf16.msra.mxu0 %v52
    %68 = vmatmul.bf16.gmra.mxu0 %v58
    %v69 = vpop.f32.mrf.mxu0
    %v70 = vadd.f32 %v37, %v69
    %v71 = vpop.f32.mrf.mxu0
    %v72 = vadd.f32 %v37, %v71
    %73 = vdwg.mxu0
    %v74 = vmul.f32 %v70, 0.5
    %v75 = vmul.f32 %v72, 0.5
    %v76 = vmul.f32 %v70, 0.70710677
    %v77 = vmul.f32 %v72, 0.70710677
    %v78 = vmul.f32 %v76, %v76
    %v79 = vmin.f32 16.0, %v78
    %v80 = vmul.f32 %v79, 2.1237322e-06
    %v81 = vadd.f32 %v80, 0.00028619796
    %v82 = vmul.f32 %v79, %v81
    %v83 = vadd.f32 %v82, 0.0036580483
    %v84 = vmul.f32 %v79, %v83
    %v85 = vadd.f32 %v84, 0.05243302
    %v86 = vmul.f32 %v79, %v85
    %v87 = vadd.f32 %v86, 0.18741608
    %v88 = vmul.f32 %v79, %v87
    %v89 = vadd.f32 %v88, 1.1283791
    %v90 = vmul.f32 %v76, %v89
    %v91 = vmul.f32 %v79, 3.8918573e-05
    %v92 = vadd.f32 %v91, 0.001143296
    %v93 = vmul.f32 %v79, %v92
    %v94 = vadd.f32 %v93, 0.014752088
    %v95 = vmul.f32 %v79, %v94
    %v96 = vadd.f32 %v95, 0.112945676
    %v97 = vmul.f32 %v79, %v96
    %v98 = vadd.f32 %v97, 0.4994258
    %v99 = vmul.f32 %v79, %v98
    %v100 = vadd.f32 %v99, 1.0
    %v101 = vrcp.pop %v100
    %v102 = vmul.f32 %v100, %v101
    %v103 = vsub.f32 1.0, %v102
    %v104 = vmul.f32 %v101, %v103
    %v105 = vadd.f32 %v101, %v104
    %vm106 = vweird.f32 %v100
    %vm107 = vweird.f32 %v101
    %vm108 = vmor %vm106, %vm107
    %v109 = vsel %vm108, %v101, %v105
    %v110 = vand.u32 2147483647, %v100
    %vm111 = vcmp.eq.f32.partialorder %v110, 8.507059e+37
    %v112 = vand.u32 %v100, 2147483648
    %v113 = vor.u32 1.1754944e-38, %v112
    %v114 = vsel %vm111, %v113, %v109
    %v115 = vmul.f32 %v90, %v114
    %v116 = vmin.f32 %v115, 1.0
    %v117 = vmax.f32 %v116, -1.0
    %v118 = vmul.f32 %v77, %v77
    %v119 = vmin.f32 16.0, %v118
    %v120 = vmul.f32 %v119, 2.1237322e-06
    %v121 = vadd.f32 %v120, 0.00028619796
    %v122 = vmul.f32 %v119, %v121
    %v123 = vadd.f32 %v122, 0.0036580483
    %v124 = vmul.f32 %v119, %v123
    %v125 = vadd.f32 %v124, 0.05243302
    %v126 = vmul.f32 %v119, %v125
    %v127 = vadd.f32 %v126, 0.18741608
    %v128 = vmul.f32 %v119, %v127
    %v129 = vadd.f32 %v128, 1.1283791
    %v130 = vmul.f32 %v77, %v129
    %v131 = vmul.f32 %v119, 3.8918573e-05
    %v132 = vadd.f32 %v131, 0.001143296
    %v133 = vmul.f32 %v119, %v132
    %v134 = vadd.f32 %v133, 0.014752088
    %v135 = vmul.f32 %v119, %v134
    %v136 = vadd.f32 %v135, 0.112945676
    %v137 = vmul.f32 %v119, %v136
    %v138 = vadd.f32 %v137, 0.4994258
    %v139 = vmul.f32 %v119, %v138
    %v140 = vadd.f32 %v139, 1.0
    %v141 = vrcp.pop %v140
    %v142 = vmul.f32 %v140, %v141
    %v143 = vsub.f32 1.0, %v142
    %v144 = vmul.f32 %v141, %v143
    %v145 = vadd.f32 %v141, %v144
    %vm146 = vweird.f32 %v140
    %vm147 = vweird.f32 %v141
    %vm148 = vmor %vm146, %vm147
    %v149 = vsel %vm148, %v141, %v145
    %v150 = vand.u32 2147483647, %v140
    %vm151 = vcmp.eq.f32.partialorder %v150, 8.507059e+37
    %v152 = vand.u32 %v140, 2147483648
    %v153 = vor.u32 1.1754944e-38, %v152
    %v154 = vsel %vm151, %v153, %v149
    %v155 = vmul.f32 %v130, %v154
    %v156 = vmin.f32 %v155, 1.0
    %v157 = vmax.f32 %v156, -1.0
    %v158 = vadd.f32 %v117, 1.0
    %v159 = vadd.f32 %v157, 1.0
    %v160 = vmul.f32 %v74, %v158
    %v161 = vmul.f32 %v75, %v159
    %v162 = vld [vmem:[#allocation2] sm:$0xff]
    %v163 = vld [vmem:[#allocation2 + $0x8] sm:$0xff]
    %v164 = vpack.c.bf16 %v161, %v160
    %v165 = vld [vmem:[%s3] sm:$0xf]
    %v166 = vld [vmem:[%s3 + $0x4] sm:$0xf]
    %v167 = vld [vmem:[%s3 + $0x8] sm:$0xf]
    %v168 = vld [vmem:[%s3 + $0xc] sm:$0xf]
    %v169 = vld [vmem:[%s3 + $0x10] sm:$0xf]
    %v170 = vld [vmem:[%s3 + $0x14] sm:$0xf]
    %v171 = vld [vmem:[%s3 + $0x18] sm:$0xf]
    %v172 = vld [vmem:[%s3 + $0x1c] sm:$0xf]
    %v173 = vld [vmem:[%s3 + $0x20] sm:$0xf]
    %v174 = vld [vmem:[%s3 + $0x24] sm:$0xf]
    %v175 = vld [vmem:[%s3 + $0x28] sm:$0xf]
    %v176 = vld [vmem:[%s3 + $0x2c] sm:$0xf]
    %v177 = vld [vmem:[%s3 + $0x30] sm:$0xf]
    %v178 = vld [vmem:[%s3 + $0x34] sm:$0xf]
    %v179 = vld [vmem:[%s3 + $0x38] sm:$0xf]
    %v180 = vld [vmem:[%s3 + $0x3c] sm:$0xf]
    %v197 = vunpack.c.l.b16 %v165
    %v198 = vunpack.c.l.b16 %v166
    %v199 = vunpack.c.l.b16 %v167
    %v200 = vunpack.c.l.b16 %v168
    %v201 = vunpack.c.l.b16 %v169
    %v202 = vunpack.c.l.b16 %v170
    %v203 = vunpack.c.l.b16 %v171
    %v204 = vunpack.c.l.b16 %v172
    %v205 = vunpack.c.l.b16 %v173
    %v206 = vunpack.c.l.b16 %v174
    %v207 = vunpack.c.l.b16 %v175
    %v208 = vunpack.c.l.b16 %v176
    %v209 = vunpack.c.l.b16 %v177
    %v210 = vunpack.c.l.b16 %v178
    %v211 = vunpack.c.l.b16 %v179
    %v212 = vunpack.c.l.b16 %v180
    %v213 = vpack.c.b16 %v198, %v197
    %v214 = vpack.c.b16 %v200, %v199
    %v215 = vpack.c.b16 %v202, %v201
    %v216 = vpack.c.b16 %v204, %v203
    %v217 = vpack.c.b16 %v206, %v205
    %v218 = vpack.c.b16 %v208, %v207
    %v219 = vpack.c.b16 %v210, %v209
    %v220 = vpack.c.b16 %v212, %v211
    %229 = vmatpush.bf16.msra.mxu0 %v220
    %230 = vmatpush.bf16.msra.mxu0 %v219
    %231 = vmatpush.bf16.msra.mxu0 %v218
    %232 = vmatpush.bf16.msra.mxu0 %v217
    %233 = vmatpush.bf16.msra.mxu0 %v216
    %234 = vmatpush.bf16.msra.mxu0 %v215
    %235 = vmatpush.bf16.msra.mxu0 %v214
    %236 = vmatpush.bf16.msra.mxu0 %v213
    %237 = vmatmul.bf16.gmra.mxu0 %v164
    %v238 = vpop.f32.mrf.mxu0
    %v239 = vadd.f32 0.0, %v238
    %v240 = vpop.f32.mrf.mxu0
    %v241 = vadd.f32 0.0, %v240
    %242 = vdwg.mxu0
    %v243 = vadd.f32 %v162, %v239
    %v244 = vadd.f32 %v163, %v241
    %245 = vst.msk [vmem:[#allocation2] sm:$0xff] %vm56, %v243
    %246 = vst.msk [vmem:[#allocation2 + $0x8] sm:$0xff] %vm56, %v244
    // Predicated region
    $region26: #{tpu_custom_call.1} parent=1 // pred_check
      %p247 = pneg %p22
    $region27: #{tpu_custom_call.1} parent=1 // pred_check_branch
      %249 = sbr.rel (%p247) target = $region29
    $region28: #{tpu_custom_call.1} parent=1 // pred_region
      %v250 = vld [vmem:[#allocation2] sm:$0xff]
      %v251 = vld [vmem:[#allocation2 + $0x8] sm:$0xff]
      %v252 = vld [vmem:[%s4] sm:$0x1]
      %v254 = vperm.slane %v252, 0
      %v256 = vadd.f32 %v250, %v254
      %v257 = vadd.f32 %v251, %v254
      %258 = vst.msk [vmem:[#allocation2] sm:$0xff] %vm56, %v256
      %259 = vst.msk [vmem:[#allocation2 + $0x8] sm:$0xff] %vm56, %v257
    $region29: #{tpu_custom_call.1} parent=1 // pred_fallthru
      _
    // Predicated region
    $region30: #{tpu_custom_call.1} parent=1 // pred_check
      _
    $region31: #{tpu_custom_call.1} parent=1 // pred_check_branch
      %261 = sbr.rel (0) target = $region33
    $region32: #{tpu_custom_call.1} parent=1 // pred_region
      %263 = vsyncadd [#allocation3], 0
      %s264 = sshll.u32 [#allocation2], 4
      %s265 = int_to_ptr.vmem [resolvable:$true] %s264
      %s266 = sshll.u32 %s5, 4
      %s267 = int_to_ptr.hbm [resolvable:$true] %s266
      %272 = dma.vmem_to_hbm [thread:$0]  %s265, 256, %s267, [#allocation3], 128, 128, 8
    $region33: #{tpu_custom_call.1} parent=1 // pred_fallthru
      _
    // Predicated region
    $region34: #{tpu_custom_call.1} parent=1 // pred_check
      _
    $region35: #{tpu_custom_call.1} parent=1 // pred_check_branch
      %274 = sbr.rel (0) target = $region37
    $region36: #{tpu_custom_call.1} parent=1 // pred_region
      %276 = dma.done [#allocation3], 256
    $region37: #{tpu_custom_call.1} parent=1 // pred_fallthru
      _
    %277 = vsyncpa [#allocation3], 1

</llo_original>
